<compile_context>
chip_gen: v7x
topology: tpu7x:2x2x1
jax: 0.10.0
libtpu: 0.0.40
codegen_flags: <defaults>
</compile_context>

<pallas_src>
import functools
import math

import jax
import jax.numpy as jnp
from jax import lax
from jax.experimental import pallas as pl
from jax.experimental.pallas import tpu as pltpu


# --------------------------- VMEM budgeting --------------------------------


@functools.lru_cache(maxsize=None)
def _vmem_budgets():
    """(scoped vmem_limit_bytes, operand-block byte budget) for this chip.

    v5e/v6e: 128 MiB VMEM -> ~96 MiB scoped limit, 48 MiB operand budget.
    v7x:      64 MiB VMEM -> ~48 MiB scoped limit, 24 MiB operand budget.
    """
    cap = 64 * 1024 * 1024                    # conservative default (v7x per-TC)
    try:
        info = pltpu.get_tpu_info()
        cap = int(getattr(info, "vmem_capacity_bytes", cap)) or cap
    except Exception:
        pass                                  # keep the conservative default
    limit = min((cap * 3) // 4, 96 * 1024 * 1024)
    return limit, limit // 2


def _compiler_params(n_axes):
    limit, _ = _vmem_budgets()
    return pltpu.CompilerParams(
        dimension_semantics=("parallel",) * n_axes,
        vmem_limit_bytes=limit)


# ----------------------------- kernels ------------------------------------


def _apply_activation(x, activation):
    if activation == "relu":
        return jnp.maximum(x, 0.0)
    if activation == "leaky_relu":
        return jnp.where(x >= 0, x, 0.01 * x)     # torch default negative_slope
    if activation == "gelu":
        # torch.nn.GELU default is the exact (erf) form; kept for faithful
        # numerics.  (tanh approximation would move work to the EUP slot but
        # differs from torch's default by ~1e-3.)
        return 0.5 * x * (1.0 + lax.erf(x * (1.0 / math.sqrt(2.0))))
    raise ValueError(f"unknown activation {activation!r}")


def _identity_skip_kernel(x_ref, o_ref, *, activation):
    # skip = Identity(x); residual = Identity(x); out = act(x + x)
    x = x_ref[...].astype(jnp.float32)
    o_ref[...] = _apply_activation(x + x, activation).astype(o_ref.dtype)


def _conv1x1_cin1_kernel(x_ref, w_ref, b_ref, o_ref, *, activation):
    # Cin == 1: skip + residual = (w + 1)*x + b  (residual folded into weight).
    # x_ref: (bn, 1, TL); w_ref/b_ref: (Cout, 1) resident; o_ref: (bn, Cout, TL)
    x = x_ref[...].astype(jnp.float32)        # (bn, 1, TL)
    w = w_ref[...][None]                      # (1, Cout, 1)   (already w + 1)
    b = b_ref[...][None]                      # (1, Cout, 1)
    out = w * x + b                           # (bn, Cout, TL) — pure VPU FMA
    o_ref[...] = _apply_activation(out, activation).astype(o_ref.dtype)


def _conv1x1_cout1_kernel(x_ref, w_ref, b_ref, o_ref, *, activation):
    # Cout == 1: skip[n,0,hw] = sum_c w[c]*x[n,c,hw] + b; out = act(skip + x).
    # x_ref: (bn, Cin, TL); w_ref: (Cin, 1); b_ref: (1, 1); o_ref: (bn, Cin, TL)
    x = x_ref[...].astype(jnp.float32)                       # (bn, Cin, TL)
    w = w_ref[...][None]                                     # (1, Cin, 1)
    skip = jnp.sum(x * w, axis=1, keepdims=True) + b_ref[...][None]  # (bn, 1, TL)
    out = skip + x
    o_ref[...] = _apply_activation(out, activation).astype(o_ref.dtype)


# ----------------------------- tiling helpers ------------------------------


def _pick_row_tile(rows, lane, itemsize, budget):
    """Largest row tile whose double-buffered (in + out) blocks fit the budget."""
    max_tm = max(8, budget // (4 * lane * itemsize))
    if max_tm >= rows:
        return rows                           # block == full dim is always legal
    return max(8, (max_tm // 8) * 8)


def _pick_conv_tiles(n, hw, c_x, c_out, itemsize, budget):
    """(bn, tl): batch block and H*W lane tile for the conv-skip path.

    Targets several MiB of operand traffic per grid step so the ~0.35 us/step
    pipeline overhead is amortized even when N is large and H*W is small.
    """
    target = min(8 * 1024 * 1024, budget // 4)       # per-step (in + out) bytes
    per_lane = (c_x + c_out) * itemsize
    if hw > 128 and hw % 128 == 0:
        tl = max(128, min(hw, (target // per_lane) // 128 * 128))
    else:
        tl = hw                                      # full extent (hw<128 or ragged)
    bn = max(1, min(n, target // max(1, per_lane * tl)))
    return bn, tl


# ----------------------------- module -------------------------------------


class ResidualBlockBase:
    """JAX/Pallas port of the PyTorch ResidualBlockBase."""

    def __init__(self, in_channels, out_channels, activation, stride, key=None):
        assert activation in ("relu", "leaky_relu", "gelu")
        self.in_channels = in_channels
        self.out_channels = out_channels
        self.activation = activation
        self.stride = stride
        if in_channels != out_channels:
            assert key is not None, "PRNG key required for the 1x1-conv skip weights"
            # Conv2d(in, out, kernel_size=1, stride): weight [Cout, Cin, 1, 1].
            # kaiming_normal_ (fan_in mode): std = gain / sqrt(Cin).
            # TODO(synk): torch.nn.init.calculate_gain has no 'gelu' entry (torch
            # itself raises); gain=1.0 is a stand-in.  Forward numerics unaffected.
            gain = {
                "relu": math.sqrt(2.0),
                "leaky_relu": math.sqrt(2.0 / (1.0 + 0.01 ** 2)),
                "gelu": 1.0,
            }[activation]
            std = gain / math.sqrt(in_channels)
            self.w = (jax.random.normal(key, (out_channels, in_channels), jnp.float32)
                      * std)                                     # [Cout, Cin]
            self.b = jnp.zeros((out_channels, 1), jnp.float32)   # constant_(bias, 0)
            # Precomputed kernel-side parameters:
            #  * Cin == 1 : fold the residual into the weight -> one FMA/element.
            #  * Cout == 1: weight as a (Cin, 1) column for sublane broadcast.
            self.w_cin1 = self.w + 1.0 if in_channels == 1 else None        # (Cout,1)
            self.w_cout1 = (self.w.reshape(in_channels, 1)
                            if out_channels == 1 else None)                  # (Cin,1)
        else:
            assert stride == 1
            self.w = None
            self.b = None

    # ---- identity-skip path: out = act(x + x), pure elementwise ----------
    def _identity_forward(self, x):
        shape = x.shape
        total = math.prod(shape)
        itemsize = x.dtype.itemsize
        _, budget = _vmem_budgets()
        flat = x.reshape(-1)
        lane = next((l for l in (1024, 512, 256, 128) if total % l == 0), None)
        if lane is None:
            # Pad to a lane multiple instead of one whole-tensor block (which
            # could exceed the VMEM limit for large, odd-sized inputs).
            lane = 128
            rows = pl.cdiv(total, lane)
            flat = jnp.pad(flat, (0, rows * lane - total))
        else:
            rows = total // lane
        x2 = flat.reshape(rows, lane)
        tm = _pick_row_tile(rows, lane, itemsize, budget)
        out = pl.pallas_call(
            functools.partial(_identity_skip_kernel, activation=self.activation),
            out_shape=jax.ShapeDtypeStruct((rows, lane), x.dtype),
            grid=(pl.cdiv(rows, tm),),
            in_specs=[pl.BlockSpec((tm, lane), lambda i: (i, 0))],
            out_specs=pl.BlockSpec((tm, lane), lambda i: (i, 0)),
            compiler_params=_compiler_params(1),
        )(x2)
        return out.reshape(-1)[:total].reshape(shape)

    # ---- conv-skip path: skip = 1x1 conv, out = act(skip + residual) -----
    def _conv_forward(self, x):
        N, C, H, W = x.shape
        cin, cout = self.in_channels, self.out_channels
        if self.stride != 1 or (cin != 1 and cout != 1):
            # Exactly the configurations where torch's forward raises a broadcast
            # error (skip [N,Cout,Ho,Wo] vs residual [N,Cin,H,W]); reject up-front.
            raise ValueError(
                "skip + residual only broadcasts for stride == 1 and "
                "(in_channels == 1 or out_channels == 1); PyTorch raises otherwise")
        HW = H * W
        itemsize = x.dtype.itemsize
        _, budget = _vmem_budgets()
        x3 = x.reshape(N, cin, HW)             # NCHW consumed directly, H*W on lanes
        c_out_ch = max(cin, cout)              # broadcast output channel count
        bn, tl = _pick_conv_tiles(N, HW, cin, c_out_ch, itemsize, budget)
        if cin == 1:
            kernel = functools.partial(_conv1x1_cin1_kernel, activation=self.activation)
            w, b = self.w_cin1, self.b                          # (Cout,1), (Cout,1)
        else:
            kernel = functools.partial(_conv1x1_cout1_kernel, activation=self.activation)
            w, b = self.w_cout1, self.b                         # (Cin,1), (1,1)
        out = pl.pallas_call(
            kernel,
            out_shape=jax.ShapeDtypeStruct((N, c_out_ch, HW), x.dtype),
            grid=(pl.cdiv(N, bn), pl.cdiv(HW, tl)),
            in_specs=[
                pl.BlockSpec((bn, cin, tl), lambda n, j: (n, 0, j)),
                pl.BlockSpec(w.shape, lambda n, j: (0, 0)),     # resident weight
                pl.BlockSpec(b.shape, lambda n, j: (0, 0)),     # resident bias
            ],
            out_specs=pl.BlockSpec((bn, c_out_ch, tl), lambda n, j: (n, 0, j)),
            compiler_params=_compiler_params(2),
        )(x3, w, b)
        return out.reshape(N, c_out_ch, H, W)

    def __call__(self, x):
        N, C, H, W = x.shape
        assert C == self.in_channels
        if self.w is None:
            return self._identity_forward(x)
        return self._conv_forward(x)


# ----------------------------- reference + demo ---------------------------


def _ref_forward(block, x):
    """Pure-JAX reference for correctness check."""
    if block.w is None:
        out = x + x
    else:
        s = block.stride
        xs = x[:, :, ::s, ::s]
        skip = (jnp.einsum("nchw,oc->nohw", xs, block.w)
                + block.b.reshape(1, -1, 1, 1))
        out = skip + x
    if block.activation == "relu":
        return jnp.maximum(out, 0.0)
    if block.activation == "leaky_relu":
        return jnp.where(out >= 0, out, 0.01 * out)
    return 0.5 * out * (1.0 + lax.erf(out / math.sqrt(2.0)))


if __name__ == "__main__":
    key = jax.random.PRNGKey(0)
    k_x1, k_x2, k_x3, k_w1, k_w2 = jax.random.split(key, 5)

    # Case 1: in_channels == out_channels -> Identity skip (gelu).
    x1 = jax.random.normal(k_x1, (2, 4, 16, 16), jnp.float32)
    block1 = ResidualBlockBase(4, 4, "gelu", stride=1)
    y1 = block1(x1)
    jax.block_until_ready(y1)
    assert y1.shape == (2, 4, 16, 16)
    assert jnp.allclose(y1, _ref_forward(block1, x1), atol=1e-5, rtol=1e-5)

    # Case 2: identity skip with leaky_relu.
    block2 = ResidualBlockBase(4, 4, "leaky_relu", stride=1)
    y2 = block2(x1)
    jax.block_until_ready(y2)
    assert jnp.allclose(y2, _ref_forward(block2, x1), atol=1e-5, rtol=1e-5)

    # Case 3: Cin == 1 != Cout -> 1x1-conv skip, residual broadcast over Cout.
    x3 = jax.random.normal(k_x2, (2, 1, 16, 16), jnp.float32)
    block3 = ResidualBlockBase(1, 4, "relu", stride=1, key=k_w1)
    y3 = block3(x3)
    jax.block_until_ready(y3)
    assert y3.shape == (2, 4, 16, 16)
    assert jnp.allclose(y3, _ref_forward(block3, x3), atol=1e-5, rtol=1e-5)

    # Case 4: Cout == 1 != Cin -> 1x1-conv skip broadcast back over Cin (gelu).
    x4 = jax.random.normal(k_x3, (2, 4, 16, 16), jnp.float32)
    block4 = ResidualBlockBase(4, 1, "gelu", stride=1, key=k_w2)
    y4 = block4(x4)
    jax.block_until_ready(y4)
    assert y4.shape == (2, 4, 16, 16)
    assert jnp.allclose(y4, _ref_forward(block4, x4), atol=1e-5, rtol=1e-5)

    # Case 5: identity skip on a non-128-multiple element count -> exercises
    # the padded lane-dense fallback (no whole-tensor blocks).
    x5 = jax.random.normal(k_x1, (2, 3, 5, 7), jnp.float32)
    block5 = ResidualBlockBase(3, 3, "relu", stride=1)
    y5 = block5(x5)
    jax.block_until_ready(y5)
    assert y5.shape == (2, 3, 5, 7)
    assert jnp.allclose(y5, _ref_forward(block5, x5), atol=1e-5, rtol=1e-5)

    print("KERNEL_OK")
</pallas_src>

<mosaic_0001>
module attributes {stable_mosaic.version = 11 : i64} {
  func.func @_identity_skip_kernel(%arg0: i32, %arg1: memref<2x1024xf32, #tpu.memory_space<vmem>>, %arg2: memref<2x1024xf32, #tpu.memory_space<vmem>>) attributes {dimension_semantics = [#tpu.dimension_semantics<parallel>], iteration_bounds = array<i64: 1>, scalar_prefetch = 0 : i64, scratch_operands = 0 : i64, tpu.core_type = #tpu.core_type<tc>, window_params = [{transform_indices = @transform_0, window_bounds = array<i64: 2, 1024>}, {transform_indices = @transform_1, window_bounds = array<i64: 2, 1024>}]} {
    %c0 = arith.constant 0 : index
    %c0_0 = arith.constant 0 : index
    %0 = vector.load %arg1[%c0, %c0_0] : memref<2x1024xf32, #tpu.memory_space<vmem>>, vector<2x1024xf32>
    %1 = arith.addf %0, %0 : vector<2x1024xf32>
    %cst = arith.constant 5.000000e-01 : f32
    %2 = vector.broadcast %cst : f32 to vector<2x1024xf32>
    %3 = arith.mulf %2, %1 : vector<2x1024xf32>
    %cst_1 = arith.constant 0.707106769 : f32
    %4 = vector.broadcast %cst_1 : f32 to vector<2x1024xf32>
    %5 = arith.mulf %1, %4 : vector<2x1024xf32>
    %6 = math.erf %5 : vector<2x1024xf32>
    %cst_2 = arith.constant 1.000000e+00 : f32
    %7 = vector.broadcast %cst_2 : f32 to vector<2x1024xf32>
    %8 = arith.addf %7, %6 : vector<2x1024xf32>
    %9 = arith.mulf %3, %8 : vector<2x1024xf32>
    %c0_3 = arith.constant 0 : index
    %c0_4 = arith.constant 0 : index
    %10 = vector.load %arg2[%c0_3, %c0_4] : memref<2x1024xf32, #tpu.memory_space<vmem>>, vector<2x1024xf32>
    tpu.vector_store %arg2[%c0_3, %c0_4], %9 {strides = array<i32>} : memref<2x1024xf32, #tpu.memory_space<vmem>>, vector<2x1024xf32>,
    return
  }
  func.func @transform_0(%arg0: i32) -> (i32, i32) {
    %c0_i32 = arith.constant 0 : i32
    %c0_i32_0 = arith.constant 0 : i32
    return %arg0, %c0_i32 : i32, i32
  }
  func.func @transform_1(%arg0: i32) -> (i32, i32) {
    %c0_i32 = arith.constant 0 : i32
    %c0_i32_0 = arith.constant 0 : i32
    return %arg0, %c0_i32 : i32, i32
  }
}

</mosaic_0001>

<llo_original>
// kernel: tpu_custom_call.1
$region0: #{tpu_custom_call.1}
  #allocation0 [shape = 'u32[]', space=smem, size = 0x4, offset = 0x4, fixed_abs, tag = 'smem constant byte address 0x4 - core index']
  #allocation1 [shape = 'u32[144,128]{1,0:T(1,128)}', space=vmem, size = 0x12000, scoped, tag = 'internal scratch']
  %s0 = inlined_call_operand.hbm [shape: f32[2,1024], index: 0, kind: input, shape index: {}]
  %s1 = inlined_call_operand.hbm [shape: f32[2,1024], index: 1, kind: output, shape index: {}]
  %s2 = sld [smem:[#allocation0]]
  $region18: #{tpu_custom_call.1} parent=0
    _
  %s4 = ssub.s32 1, %s2
  %s5 = scalar_select 0, %s4, %s2
  $region1: #{tpu_custom_call.1} parent=0
    #allocation2 [shape = 'u8[8192]{0}', space=vmem, size = 0x2000, scoped, tag = 'input window, operand 0, single buffered']
    #allocation3 [shape = 's32[1]{0}', space=sflag, size = 0x4, scoped, tag = 'scoped memory for tpu_custom_call.1']
    #allocation4 [shape = 's32[1]{0}', space=sflag, size = 0x4, scoped, tag = 'scoped memory for tpu_custom_call.1']
    #allocation5 [shape = 'u8[8192]{0}', space=vmem, size = 0x2000, scoped, tag = 'output window, operand 0, single buffered']
    %6 = vsyncpa [#allocation3], 0
    %7 = vsyncpa [#allocation4], 0
    // Predicated region
    $region2: #{tpu_custom_call.1} parent=1 // pred_check
      _
    $region3: #{tpu_custom_call.1} parent=1 // pred_check_branch
      %9 = sbr.rel (0) target = $region5
    $region4: #{tpu_custom_call.1} parent=1 // pred_region
      %s11 = ssub.s32 256, 256
      %12 = vsyncadd [#allocation3], %s11
      %s14 = sshll.u32 [#allocation2], 4
      %s15 = int_to_ptr.vmem [resolvable:$true] %s14
      %17 = dma.hbm_to_vmem [thread:$0]  %s0, 256, %s15, [#allocation3]
    $region5: #{tpu_custom_call.1} parent=1 // pred_fallthru
      _
    // Predicated region
    $region6: #{tpu_custom_call.1} parent=1 // pred_check
      _
    $region7: #{tpu_custom_call.1} parent=1 // pred_check_branch
      %19 = sbr.rel (0) target = $region9
    $region8: #{tpu_custom_call.1} parent=1 // pred_region
      %20 = dma.done [#allocation3], 256
    $region9: #{tpu_custom_call.1} parent=1 // pred_fallthru
      _
    %v21 = vld [vmem:[#allocation2] sm:$0xff]
    %v22 = vld [vmem:[#allocation2 + $0x8] sm:$0xff]
    %v23 = vadd.f32 %v21, %v21
    %v24 = vadd.f32 %v22, %v22
    %v25 = vmul.f32 %v23, 0.5
    %v26 = vmul.f32 %v24, 0.5
    %v27 = vmul.f32 %v23, 0.70710677
    %v28 = vmul.f32 %v24, 0.70710677
    %v29 = verf.f32.pop %v27
    %v30 = verf.f32.pop %v28
    %v31 = vadd.f32 %v29, 1.0
    %v32 = vadd.f32 %v30, 1.0
    %v33 = vmul.f32 %v25, %v31
    %v34 = vmul.f32 %v26, %v32
    %35 = vst [vmem:[#allocation5] sm:$0xff] %v33
    %36 = vst [vmem:[#allocation5 + $0x8] sm:$0xff] %v34
    // Predicated region
    $region10: #{tpu_custom_call.1} parent=1 // pred_check
      _
    $region11: #{tpu_custom_call.1} parent=1 // pred_check_branch
      %38 = sbr.rel (0) target = $region13
    $region12: #{tpu_custom_call.1} parent=1 // pred_region
      %s40 = ssub.s32 256, 256
      %41 = vsyncadd [#allocation4], %s40
      %s43 = sshll.u32 [#allocation5], 4
      %s44 = int_to_ptr.vmem [resolvable:$true] %s43
      %46 = dma.vmem_to_hbm [thread:$0]  %s44, 256, %s1, [#allocation4]
    $region13: #{tpu_custom_call.1} parent=1 // pred_fallthru
      _
    // Predicated region
    $region14: #{tpu_custom_call.1} parent=1 // pred_check
      _
    $region15: #{tpu_custom_call.1} parent=1 // pred_check_branch
      %48 = sbr.rel (0) target = $region17
    $region16: #{tpu_custom_call.1} parent=1 // pred_region
      %49 = dma.done [#allocation4], 256
    $region17: #{tpu_custom_call.1} parent=1 // pred_fallthru
      _
    %50 = vsyncpa [#allocation3], 1
    %51 = vsyncpa [#allocation4], 1

</llo_original>
